<compile_context>
chip_gen: v6e
topology: v6e:2x2x1
jax: 0.10.0
libtpu: 0.0.40
codegen_flags: <defaults>
</compile_context>

<pallas_src>
import jax
import jax.numpy as jnp
from jax import lax
from jax.experimental import pallas as pl
from jax.experimental.pallas import tpu as pltpu

_LANE = 128
_SUBLANE = 8


def _round_up(x, m):
    return (x + m - 1) // m * m


def _cdiv(a, b):
    return (a + b - 1) // b


def _tpu_defaults():
    """Per-generation tiling defaults (row tile, VMEM limit/budget, #cores)."""
    kind = ""
    try:
        kind = jax.devices()[0].device_kind.lower()
    except Exception:  # defensive: unknown backends
        pass
    if "v7" in kind:
        # v7x: 64 MiB VMEM per TC, 2 TCs/chip, compute-bound from tm >= ~320.
        return dict(tm=512, vmem_limit=52 * 2**20, vmem_budget=40 * 2**20, cores=2)
    if "v6" in kind:
        # v6e: 128 MiB VMEM; needs tm ~768-1024 to be compute-bound on the
        # re-streamed W tile (918 TF/s vs ~1.37 TB/s HBM).
        return dict(tm=1024, vmem_limit=100 * 2**20, vmem_budget=84 * 2**20, cores=1)
    if "v5" in kind and ("lite" in kind or "v5e" in kind):
        # v5e: compute-bound already at tm ~ 240; don't inflate tiles.
        return dict(tm=512, vmem_limit=64 * 2**20, vmem_budget=52 * 2**20, cores=1)
    # Unknown generation: conservative (v7x-sized) VMEM budget.
    return dict(tm=512, vmem_limit=48 * 2**20, vmem_budget=36 * 2**20, cores=1)


def _plan_tiles(M, K, tn, rank, itemsize, out_itemsize, cfg, tm_target):
    """Pick (tm, tk, nk) so the double-buffered slabs fit the VMEM budget."""
    budget = cfg["vmem_budget"]

    def vmem_bytes(tm, tk, k_tiled):
        b = 2 * (tm * tk + tn * tk + rank * tk + tn * rank) * itemsize  # inputs x2 buf
        b += 2 * tm * tn * out_itemsize                                 # output tile
        b += 2 * tn * 4                                                 # f32 bias tile
        b += tm * rank * itemsize                                       # z (compute dtype)
        if k_tiled:
            b += tm * tn * 4 + tm * rank * 4                            # f32 accumulators
        return b

    tm = _round_up(min(tm_target, max(M, _SUBLANE)), _SUBLANE)
    # Megacore coverage (v7x): keep >= 2 row tiles when M is large enough that
    # each half still sits near the compute roofline.
    if cfg["cores"] >= 2 and M <= tm and M >= 512:
        tm = _round_up(_cdiv(M, 2), _SUBLANE)

    if vmem_bytes(tm, K, False) <= budget:
        return tm, K, 1

    # Full-K slabs do not fit: add a K-reduction grid axis (keep tm large) with
    # tk a multiple of 128 that divides K exactly (no padding of W along K).
    if K % _LANE == 0:
        for cand in (8192, 6144, 4096, 3072, 2048, 1536, 1024, 768, 512, 384, 256, 128):
            if cand < K and K % cand == 0 and vmem_bytes(tm, cand, True) <= budget:
                return tm, cand, K // cand

    # Last resort: shrink the row tile with the full-K slab.
    # TODO(synk): combine tm shrink + K tiling for extreme (K, N) shapes where
    #             neither lever alone fits the budget.
    while tm > 256 and vmem_bytes(tm, K, False) > budget:
        tm = max(256, _round_up(tm // 2, _SUBLANE))
    return tm, K, 1


def _make_kernel(nk, hoist_z):
    contract = (((1,), (1,)), ((), ()))  # a @ b^T (contract the last dims)

    if nk == 1 and hoist_z:
        # 2-D grid (i, j): z = x @ A^T computed once per row tile at j == 0 and
        # reused for every output-column tile (requires j to stay sequential).
        def kernel(x_ref, w_ref, b_ref, a_ref, bs_ref, o_ref, zc_ref):
            @pl.when(pl.program_id(1) == 0)
            def _():
                zc_ref[...] = lax.dot_general(
                    x_ref[...], a_ref[...], dimension_numbers=contract,
                    preferred_element_type=jnp.float32).astype(zc_ref.dtype)

            base = lax.dot_general(
                x_ref[...], w_ref[...], dimension_numbers=contract,
                preferred_element_type=jnp.float32)
            lora = lax.dot_general(
                zc_ref[...], bs_ref[...], dimension_numbers=contract,
                preferred_element_type=jnp.float32)
            # Single fused epilogue -> one pass / one store over the tile.
            o_ref[...] = (base + lora + b_ref[...]).astype(o_ref.dtype)
        return kernel

    if nk == 1 and not hoist_z:
        # 2-D grid with both axes "parallel" (megacore coverage when there is a
        # single row tile); z is recomputed per tile (cheap: rank << tn).
        def kernel(x_ref, w_ref, b_ref, a_ref, bs_ref, o_ref):
            z = lax.dot_general(
                x_ref[...], a_ref[...], dimension_numbers=contract,
                preferred_element_type=jnp.float32).astype(x_ref.dtype)
            base = lax.dot_general(
                x_ref[...], w_ref[...], dimension_numbers=contract,
                preferred_element_type=jnp.float32)
            lora = lax.dot_general(
                z, bs_ref[...], dimension_numbers=contract,
                preferred_element_type=jnp.float32)
            o_ref[...] = (base + lora + b_ref[...]).astype(o_ref.dtype)
        return kernel

    last = nk - 1

    # 3-D grid (i, j, k): K-reduction axis with an f32 VMEM accumulator.
    # z is accumulated over k only at j == 0 and reused for every j.
    def kernel(x_ref, w_ref, b_ref, a_ref, bs_ref, o_ref, acc_ref, z_ref, zc_ref):
        j = pl.program_id(1)
        k = pl.program_id(2)

        @pl.when(j == 0)
        def _():
            zk = lax.dot_general(
                x_ref[...], a_ref[...], dimension_numbers=contract,
                preferred_element_type=jnp.float32)
            z32 = jnp.where(k == 0, zk, z_ref[...] + zk)
            z_ref[...] = z32
            zc_ref[...] = z32.astype(zc_ref.dtype)   # tiny (tm, rank) cast

        contrib = lax.dot_general(
            x_ref[...], w_ref[...], dimension_numbers=contract,
            preferred_element_type=jnp.float32)

        @pl.when(k == 0)
        def _():
            acc_ref[...] = contrib

        @pl.when((k > 0) & (k < last))
        def _():
            acc_ref[...] += contrib

        @pl.when(k == last)
        def _():
            lora = lax.dot_general(
                zc_ref[...], bs_ref[...], dimension_numbers=contract,
                preferred_element_type=jnp.float32)
            o_ref[...] = (acc_ref[...] + contrib + lora + b_ref[...]).astype(o_ref.dtype)

    return kernel


def prepare_lora_linear(w_base, b_base, lora_a, lora_b, scaling, *,
                        compute_dtype=None, tn=None):
    """One-time weight preprocessing; cache the result across forward calls.

    Casts to the adapter compute dtype, folds alpha/rank into lora_B, and pads
    the output dimension to a lane-dense multiple of 128 — work that would
    otherwise re-read the (out, in) weight from HBM on every forward.
    """
    out_features, in_features = w_base.shape
    rank = lora_a.shape[0]
    if compute_dtype is None:
        compute_dtype = lora_a.dtype

    n_pad = _round_up(out_features, _LANE)
    if tn is None:
        tn_sel = _LANE
        for cand in (256, 512, 384, 128):      # prefer 256-wide lane-dense tiles
            if cand <= n_pad and n_pad % cand == 0:
                tn_sel = cand
                break
        tn = tn_sel
    else:
        tn = _round_up(tn, _LANE)
        n_pad = _round_up(out_features, tn)

    w = w_base.astype(compute_dtype)                      # (out, in), untransposed
    a = lora_a.astype(compute_dtype)                      # (rank, in)
    bs = (lora_b.astype(jnp.float32) * float(scaling)).astype(compute_dtype)
    bias = b_base.astype(jnp.float32).reshape(1, out_features)
    if n_pad != out_features:
        w = jnp.pad(w, ((0, n_pad - out_features), (0, 0)))
        bs = jnp.pad(bs, ((0, n_pad - out_features), (0, 0)))
        bias = jnp.pad(bias, ((0, 0), (0, n_pad - out_features)))

    return dict(w=w, bias=bias, a=a, bs=bs, in_features=in_features,
                out_features=out_features, rank=rank, n_pad=n_pad, tn=tn,
                compute_dtype=compute_dtype)


def lora_linear_forward(x, w_base=None, b_base=None, lora_a=None, lora_b=None,
                        scaling=None, *, prepared=None, compute_dtype=None,
                        tm=None, tn=None, tk=None, vmem_limit_bytes=None):
    """Fused LinearLoraLayer forward.

    x : (..., in_features).  Pass either the raw parameters or a cached
    `prepared = prepare_lora_linear(...)` (preferred: no per-call weight copies).
    """
    if prepared is None:
        if w_base is None:
            raise ValueError("pass either raw parameters or `prepared=`")
        prepared = prepare_lora_linear(w_base, b_base, lora_a, lora_b, scaling,
                                       compute_dtype=compute_dtype, tn=tn)
    p = prepared
    cfg = _tpu_defaults()

    previous_dtype = x.dtype
    compute_dtype = p["compute_dtype"]
    K, N = p["in_features"], p["out_features"]
    n_pad, tn_, rank = p["n_pad"], p["tn"], p["rank"]

    lead = x.shape[:-1]
    M = 1
    for d in lead:
        M *= d
    # Mirrors `x = x.to(lora_A.weight.dtype)` (no-op if already that dtype).
    x2d = x.reshape(M, K).astype(compute_dtype)

    itemsize = jnp.dtype(compute_dtype).itemsize
    out_itemsize = jnp.dtype(previous_dtype).itemsize
    tm_target = cfg["tm"] if tm is None else tm
    tm_, tk_, nk = _plan_tiles(M, K, tn_, rank, itemsize, out_itemsize, cfg, tm_target)
    if tk is not None:                        # explicit override (tests / tuning)
        if K % tk != 0:
            raise ValueError(f"tk={tk} must divide in_features={K}")
        tk_, nk = tk, K // tk

    gi = _cdiv(M, tm_)
    m_pad = gi * tm_
    if m_pad != M:
        x2d = jnp.pad(x2d, ((0, m_pad - M), (0, 0)))
    gj = n_pad // tn_

    # Hoist z across j only when j is sequential; with a single row tile on a
    # multi-core chip we recompute z per tile so j can be "parallel"
    # (megacore coverage for decode-sized M).
    hoist = not (nk == 1 and gi == 1 and gj >= 2 and cfg["cores"] >= 2)

    if nk == 1:
        grid = (gi, gj)
        x_map, w_map = (lambda i, j: (i, 0)), (lambda i, j: (j, 0))
        b_map, a_map = (lambda i, j: (0, j)), (lambda i, j: (0, 0))
        bs_map, o_map = (lambda i, j: (j, 0)), (lambda i, j: (i, j))
        if hoist:
            scratch = [pltpu.VMEM((tm_, rank), compute_dtype)]
            semantics = ("parallel", "arbitrary")       # j carries the z scratch
        else:
            scratch = []
            semantics = ("parallel", "parallel")
    else:
        grid = (gi, gj, nk)
        x_map, w_map = (lambda i, j, k: (i, k)), (lambda i, j, k: (j, k))
        b_map, a_map = (lambda i, j, k: (0, j)), (lambda i, j, k: (0, k))
        bs_map, o_map = (lambda i, j, k: (j, 0)), (lambda i, j, k: (i, j))
        scratch = [pltpu.VMEM((tm_, tn_), jnp.float32),     # base accumulator
                   pltpu.VMEM((tm_, rank), jnp.float32),    # z accumulator
                   pltpu.VMEM((tm_, rank), compute_dtype)]  # z, compute dtype
        semantics = ("parallel", "arbitrary", "arbitrary")

    flops = 2 * m_pad * n_pad * (K + rank) + 2 * m_pad * rank * K
    bytes_accessed = (
        x2d.size * itemsize * (1 if nk == 1 else gj)   # x re-streamed per j if K-tiled
        + p["w"].size * itemsize * gi                  # W streamed once per row tile
        + p["a"].size * itemsize * gi
        + p["bs"].size * itemsize * gi
        + p["bias"].size * 4 * gi
        + m_pad * n_pad * out_itemsize)
    cost = pl.CostEstimate(flops=int(flops), transcendentals=0,
                           bytes_accessed=int(bytes_accessed))

    out2d = pl.pallas_call(
        _make_kernel(nk, hoist),
        out_shape=jax.ShapeDtypeStruct((m_pad, n_pad), previous_dtype),
        grid_spec=pltpu.PrefetchScalarGridSpec(
            num_scalar_prefetch=0,
            grid=grid,
            in_specs=[
                pl.BlockSpec((tm_, tk_), x_map),     # x rows
                pl.BlockSpec((tn_, tk_), w_map),     # base weight (out, in)
                pl.BlockSpec((1, tn_), b_map),       # f32 bias
                pl.BlockSpec((rank, tk_), a_map),    # lora_A
                pl.BlockSpec((tn_, rank), bs_map),   # lora_B pre-scaled by alpha/rank
            ],
            out_specs=pl.BlockSpec((tm_, tn_), o_map),
            scratch_shapes=scratch,
        ),
        compiler_params=pltpu.CompilerParams(
            dimension_semantics=semantics,
            vmem_limit_bytes=int(cfg["vmem_limit"] if vmem_limit_bytes is None
                                 else vmem_limit_bytes),
        ),
        cost_estimate=cost,
    )(x2d, p["w"], p["bias"], p["a"], p["bs"])

    out = out2d
    if m_pad != M or n_pad != N:
        out = out[:M, :N]
    return out.reshape(*lead, N)


def lora_linear_reference(x, w_base, b_base, lora_a, lora_b, scaling):
    """Pure-JAX f32 reference of the module forward."""
    x32 = x.astype(jnp.float32)
    base = jnp.einsum("bsi,oi->bso", x32, w_base.astype(jnp.float32))
    base = base + b_base.astype(jnp.float32)
    z = jnp.einsum("bsi,ri->bsr", x32, lora_a.astype(jnp.float32))
    lora = jnp.einsum("bsr,or->bso", z, lora_b.astype(jnp.float32))
    return (base + lora * scaling).astype(x.dtype)


if __name__ == "__main__":
    # ---- Test 1: small f32 case (single tile, tight tolerance) ---------------
    batch, seq = 2, 8
    in_features, out_features = 32, 64
    rank, alpha = 8, 16
    scaling = alpha / rank

    key = jax.random.PRNGKey(0)
    kx, kw, kb, ka, kbb = jax.random.split(key, 5)
    x = jax.random.normal(kx, (batch, seq, in_features), jnp.float32)
    w_base = jax.random.normal(kw, (out_features, in_features), jnp.float32) * 0.1
    b_base = jax.random.normal(kb, (out_features,), jnp.float32) * 0.1
    lora_a = jax.random.normal(ka, (rank, in_features), jnp.float32) * 0.1
    lora_b = jax.random.normal(kbb, (out_features, rank), jnp.float32) * 0.1

    out = jax.block_until_ready(
        lora_linear_forward(x, w_base, b_base, lora_a, lora_b, scaling))
    ref = lora_linear_reference(x, w_base, b_base, lora_a, lora_b, scaling)
    assert out.shape == (batch, seq, out_features)
    assert out.dtype == x.dtype
    assert jnp.allclose(out, ref, atol=1e-4, rtol=1e-4), "f32 mismatch vs reference"

    # ---- Test 2: bf16 weights, multiple output tiles, cached prepared params -
    batch2, seq2 = 2, 5                      # M = 10 -> padded rows
    in2, out2, rank2, alpha2 = 128, 512, 16, 32
    scaling2 = alpha2 / rank2
    k1, k2, k3, k4, k5 = jax.random.split(jax.random.PRNGKey(1), 5)
    x2 = jax.random.normal(k1, (batch2, seq2, in2), jnp.float32)
    w2 = (jax.random.normal(k2, (out2, in2), jnp.float32) * 0.1).astype(jnp.bfloat16)
    b2 = (jax.random.normal(k3, (out2,), jnp.float32) * 0.1).astype(jnp.bfloat16)
    a2 = (jax.random.normal(k4, (rank2, in2), jnp.float32) * 0.1).astype(jnp.bfloat16)
    bb2 = (jax.random.normal(k5, (out2, rank2), jnp.float32) * 0.1).astype(jnp.bfloat16)

    prepared2 = prepare_lora_linear(w2, b2, a2, bb2, scaling2)   # one-time prep
    out_b = jax.block_until_ready(lora_linear_forward(x2, prepared=prepared2))
    x2_rounded = x2.astype(jnp.bfloat16).astype(jnp.float32)     # isolate compute error
    ref_b = lora_linear_reference(x2_rounded, w2, b2, a2, bb2, scaling2)
    assert out_b.shape == (batch2, seq2, out2)
    assert out_b.dtype == x2.dtype
    assert jnp.allclose(out_b, ref_b, atol=1e-1, rtol=5e-2), "bf16 mismatch vs reference"

    # ---- Test 3: forced K-reduction grid axis (f32 accumulator path) ---------
    batch3, seq3 = 3, 8
    in3, out3, rank3, alpha3 = 512, 512, 16, 32
    scaling3 = alpha3 / rank3
    q1, q2, q3, q4, q5 = jax.random.split(jax.random.PRNGKey(2), 5)
    x3 = jax.random.normal(q1, (batch3, seq3, in3), jnp.float32)
    w3 = (jax.random.normal(q2, (out3, in3), jnp.float32) * 0.1).astype(jnp.bfloat16)
    b3 = (jax.random.normal(q3, (out3,), jnp.float32) * 0.1).astype(jnp.bfloat16)
    a3 = (jax.random.normal(q4, (rank3, in3), jnp.float32) * 0.1).astype(jnp.bfloat16)
    bb3 = (jax.random.normal(q5, (out3, rank3), jnp.float32) * 0.1).astype(jnp.bfloat16)

    out_c = jax.block_until_ready(
        lora_linear_forward(x3, w3, b3, a3, bb3, scaling3, tk=128))
    x3_rounded = x3.astype(jnp.bfloat16).astype(jnp.float32)
    ref_c = lora_linear_reference(x3_rounded, w3, b3, a3, bb3, scaling3)
    assert out_c.shape == (batch3, seq3, out3)
    assert out_c.dtype == x3.dtype
    assert jnp.allclose(out_c, ref_c, atol=1e-1, rtol=5e-2), "K-tiled mismatch vs reference"

    print("KERNEL_OK")
</pallas_src>

<mosaic_0001>
module attributes {stable_mosaic.version = 11 : i64} {
  func.func @kernel(%arg0: i32, %arg1: i32, %arg2: memref<16x32xf32, #tpu.memory_space<vmem>>, %arg3: memref<128x32xf32, #tpu.memory_space<vmem>>, %arg4: memref<1x128xf32, #tpu.memory_space<vmem>>, %arg5: memref<8x32xf32, #tpu.memory_space<vmem>>, %arg6: memref<128x8xf32, #tpu.memory_space<vmem>>, %arg7: memref<16x128xf32, #tpu.memory_space<vmem>>, %arg8: memref<16x8xf32, #tpu.memory_space<vmem>>) attributes {dimension_semantics = [#tpu.dimension_semantics<parallel>, #tpu.dimension_semantics<arbitrary>], iteration_bounds = array<i64: 1, 1>, scalar_prefetch = 0 : i64, scratch_operands = 1 : i64, tpu.core_type = #tpu.core_type<tc>, window_params = [{transform_indices = @transform_0, window_bounds = array<i64: 16, 32>}, {transform_indices = @transform_1, window_bounds = array<i64: 128, 32>}, {transform_indices = @transform_2, window_bounds = array<i64: 1, 128>}, {pipeline_mode = #tpu.pipeline_mode<synchronous>, transform_indices = @transform_3, window_bounds = array<i64: 8, 32>}, {transform_indices = @transform_4, window_bounds = array<i64: 128, 8>}, {transform_indices = @transform_5, window_bounds = array<i64: 16, 128>}]} {
    %c0_i32 = arith.constant 0 : i32
    %0 = arith.cmpi eq, %arg1, %c0_i32 : i32
    %1 = arith.extui %0 : i1 to i32
    %c0_i32_0 = arith.constant 0 : i32
    %2 = arith.cmpi ne, %1, %c0_i32_0 : i32
    scf.if %2 {
      %c0_13 = arith.constant 0 : index
      %c0_14 = arith.constant 0 : index
      %14 = vector.load %arg2[%c0_13, %c0_14] : memref<16x32xf32, #tpu.memory_space<vmem>>, vector<16x32xf32>
      %c0_15 = arith.constant 0 : index
      %c0_16 = arith.constant 0 : index
      %15 = vector.load %arg5[%c0_15, %c0_16] : memref<8x32xf32, #tpu.memory_space<vmem>>, vector<8x32xf32>
      %cst_17 = arith.constant dense<0.000000e+00> : vector<16x8xf32>
      %16 = tpu.matmul %14, %15, %cst_17 {dimension_numbers = #tpu.dot_dimension_numbers<[1], [1], [0], [0], [0, 0, 1, 0], [], []>} : vector<16x32xf32>, vector<8x32xf32>, vector<16x8xf32> -> vector<16x8xf32>
      %c0_18 = arith.constant 0 : index
      %c0_19 = arith.constant 0 : index
      %17 = vector.load %arg8[%c0_18, %c0_19] : memref<16x8xf32, #tpu.memory_space<vmem>>, vector<16x8xf32>
      tpu.vector_store %arg8[%c0_18, %c0_19], %16 {strides = array<i32>} : memref<16x8xf32, #tpu.memory_space<vmem>>, vector<16x8xf32>,
    } else {
    }
    %c0 = arith.constant 0 : index
    %c0_1 = arith.constant 0 : index
    %3 = vector.load %arg2[%c0, %c0_1] : memref<16x32xf32, #tpu.memory_space<vmem>>, vector<16x32xf32>
    %c0_2 = arith.constant 0 : index
    %c0_3 = arith.constant 0 : index
    %4 = vector.load %arg3[%c0_2, %c0_3] : memref<128x32xf32, #tpu.memory_space<vmem>>, vector<128x32xf32>
    %cst = arith.constant dense<0.000000e+00> : vector<16x128xf32>
    %5 = tpu.matmul %3, %4, %cst {dimension_numbers = #tpu.dot_dimension_numbers<[1], [1], [0], [0], [0, 0, 1, 0], [], []>} : vector<16x32xf32>, vector<128x32xf32>, vector<16x128xf32> -> vector<16x128xf32>
    %c0_4 = arith.constant 0 : index
    %c0_5 = arith.constant 0 : index
    %6 = vector.load %arg8[%c0_4, %c0_5] : memref<16x8xf32, #tpu.memory_space<vmem>>, vector<16x8xf32>
    %c0_6 = arith.constant 0 : index
    %c0_7 = arith.constant 0 : index
    %7 = vector.load %arg6[%c0_6, %c0_7] : memref<128x8xf32, #tpu.memory_space<vmem>>, vector<128x8xf32>
    %cst_8 = arith.constant dense<0.000000e+00> : vector<16x128xf32>
    %8 = tpu.matmul %6, %7, %cst_8 {dimension_numbers = #tpu.dot_dimension_numbers<[1], [1], [0], [0], [0, 0, 1, 0], [], []>} : vector<16x8xf32>, vector<128x8xf32>, vector<16x128xf32> -> vector<16x128xf32>
    %9 = arith.addf %5, %8 : vector<16x128xf32>
    %c0_9 = arith.constant 0 : index
    %c0_10 = arith.constant 0 : index
    %10 = vector.load %arg4[%c0_9, %c0_10] : memref<1x128xf32, #tpu.memory_space<vmem>>, vector<1x128xf32>
    %11 = vector.broadcast %10 : vector<1x128xf32> to vector<16x128xf32>
    %12 = arith.addf %9, %11 : vector<16x128xf32>
    %c0_11 = arith.constant 0 : index
    %c0_12 = arith.constant 0 : index
    %13 = vector.load %arg7[%c0_11, %c0_12] : memref<16x128xf32, #tpu.memory_space<vmem>>, vector<16x128xf32>
    tpu.vector_store %arg7[%c0_11, %c0_12], %12 {strides = array<i32>} : memref<16x128xf32, #tpu.memory_space<vmem>>, vector<16x128xf32>,
    return
  }
  func.func @transform_0(%arg0: i32, %arg1: i32) -> (i32, i32) {
    %c0_i32 = arith.constant 0 : i32
    %c0_i32_0 = arith.constant 0 : i32
    return %arg0, %c0_i32 : i32, i32
  }
  func.func @transform_1(%arg0: i32, %arg1: i32) -> (i32, i32) {
    %c0_i32 = arith.constant 0 : i32
    %c0_i32_0 = arith.constant 0 : i32
    return %arg1, %c0_i32 : i32, i32
  }
  func.func @transform_2(%arg0: i32, %arg1: i32) -> (i32, i32) {
    %c0_i32 = arith.constant 0 : i32
    %c0_i32_0 = arith.constant 0 : i32
    return %c0_i32, %arg1 : i32, i32
  }
  func.func @transform_3(%arg0: i32, %arg1: i32) -> (i32, i32) {
    %c0_i32 = arith.constant 0 : i32
    %c0_i32_0 = arith.constant 0 : i32
    %c0_i32_1 = arith.constant 0 : i32
    return %c0_i32, %c0_i32_0 : i32, i32
  }
  func.func @transform_4(%arg0: i32, %arg1: i32) -> (i32, i32) {
    %c0_i32 = arith.constant 0 : i32
    %c0_i32_0 = arith.constant 0 : i32
    return %arg1, %c0_i32 : i32, i32
  }
  func.func @transform_5(%arg0: i32, %arg1: i32) -> (i32, i32) {
    %c0_i32 = arith.constant 0 : i32
    return %arg0, %arg1 : i32, i32
  }
}

</mosaic_0001>

<llo_original>
// kernel: tpu_custom_call.1
$region0: #{tpu_custom_call.1}
  #allocation0 [shape = 'u32[]', space=smem, size = 0x4, offset = 0x4, fixed_abs, tag = 'smem constant byte address 0x4 - core index']
  #allocation1 [shape = 'u32[144,128]{1,0:T(1,128)}', space=vmem, size = 0x12000, scoped, tag = 'internal scratch']
  #allocation2 [shape = 'f32[16,8]{1,0:T(8,128)}', space=vmem, size = 0x2000, scoped, tag = 'scratch operand']
  %s0 = inlined_call_operand.vmem [shape: f32[16,32], index: 0, kind: input, shape index: {}]
  %s1 = inlined_call_operand.vmem [shape: f32[128,32], index: 1, kind: input, shape index: {}]
  %s2 = inlined_call_operand.vmem [shape: f32[1,128], index: 2, kind: input, shape index: {}]
  %s3 = inlined_call_operand.vmem [shape: f32[8,32], index: 3, kind: input, shape index: {}]
  %s4 = inlined_call_operand.vmem [shape: f32[128,8], index: 4, kind: input, shape index: {}]
  %s5 = inlined_call_operand.hbm [shape: f32[16,128], index: 5, kind: output, shape index: {}]
  %s6 = sld [smem:[#allocation0]]
  $region34: #{tpu_custom_call.1} parent=0
    _
  %s8 = ssub.s32 1, %s6
  %s9 = scalar_select 0, %s8, %s6
  $region1: #{tpu_custom_call.1} parent=0
    #allocation3 [shape = 'u8[8192]{0}', space=vmem, size = 0x2000, scoped, tag = 'output window, operand 0, single buffered']
    #allocation4 [shape = 's32[1]{0}', space=sflag, size = 0x4, scoped, tag = 'scoped memory for tpu_custom_call.1']
    %10 = vsyncpa [#allocation4], 0
    // Predicated region
    $region2: #{tpu_custom_call.1} parent=1 // pred_check
      _
    $region3: #{tpu_custom_call.1} parent=1 // pred_check_branch
      %12 = sbr.rel (0) target = $region5
    $region4: #{tpu_custom_call.1} parent=1 // pred_region
      _
    $region5: #{tpu_custom_call.1} parent=1 // pred_fallthru
      _
    // Predicated region
    $region6: #{tpu_custom_call.1} parent=1 // pred_check
      _
    $region7: #{tpu_custom_call.1} parent=1 // pred_check_branch
      %14 = sbr.rel (0) target = $region9
    $region8: #{tpu_custom_call.1} parent=1 // pred_region
      _
    $region9: #{tpu_custom_call.1} parent=1 // pred_fallthru
      _
    // Predicated region
    $region10: #{tpu_custom_call.1} parent=1 // pred_check
      _
    $region11: #{tpu_custom_call.1} parent=1 // pred_check_branch
      %16 = sbr.rel (0) target = $region13
    $region12: #{tpu_custom_call.1} parent=1 // pred_region
      _
    $region13: #{tpu_custom_call.1} parent=1 // pred_fallthru
      _
    // Predicated region
    $region14: #{tpu_custom_call.1} parent=1 // pred_check
      _
    $region15: #{tpu_custom_call.1} parent=1 // pred_check_branch
      %18 = sbr.rel (0) target = $region17
    $region16: #{tpu_custom_call.1} parent=1 // pred_region
      _
    $region17: #{tpu_custom_call.1} parent=1 // pred_fallthru
      _
    // Predicated region
    $region18: #{tpu_custom_call.1} parent=1 // pred_check
      _
    $region19: #{tpu_custom_call.1} parent=1 // pred_check_branch
      %20 = sbr.rel (0) target = $region21
    $region20: #{tpu_custom_call.1} parent=1 // pred_region
      _
    $region21: #{tpu_custom_call.1} parent=1 // pred_fallthru
      _
    %p21 = scmp.eq.s32.totalorder 0, 0
    // Predicated region
    $region22: #{tpu_custom_call.1} parent=1 // pred_check
      %p22 = pneg %p21
    $region23: #{tpu_custom_call.1} parent=1 // pred_check_branch
      %24 = sbr.rel (%p22) target = $region25
    $region24: #{tpu_custom_call.1} parent=1 // pred_region
      %v25 = vld [vmem:[%s0] sm:$0xff]
      %v26 = vld [vmem:[%s0 + $0x8] sm:$0xff]
      %v27 = vld [vmem:[%s3] sm:$0xff]
      %vm28 = vcmask 261120
      %v30 = vsel %vm28, %v25, 0
      %v33 = vsel %vm28, %v26, 0
      %v36 = vsel %vm28, %v27, 0
      %38 = vmatprep.subr.mxu0 0.0
      %39 = vmatpush1.xpose.msra.mxu0 0.0
      %40 = vmatprep.subr.mxu0 0.0
      %41 = vmatpush1.xpose.msra.mxu0 0.0
      %42 = vmatprep.subr.mxu0 0.0
      %43 = vmatpush1.xpose.msra.mxu0 0.0
      %44 = vmatprep.subr.mxu0 0.0
      %45 = vmatpush1.xpose.msra.mxu0 0.0
      %46 = vmatprep.subr.mxu0 0.0
      %47 = vmatpush1.xpose.msra.mxu0 0.0
      %48 = vmatprep.subr.mxu0 0.0
      %49 = vmatpush1.xpose.msra.mxu0 0.0
      %50 = vmatprep.subr.mxu0 0.0
      %51 = vmatpush1.xpose.msra.mxu0 0.0
      %52 = vmatprep.subr.mxu0 0.0
      %53 = vmatpush1.xpose.msra.mxu0 0.0
      %54 = vmatprep.subr.mxu0 0.0
      %55 = vmatpush1.xpose.msra.mxu0 0.0
      %56 = vmatprep.subr.mxu0 0.0
      %57 = vmatpush1.xpose.msra.mxu0 0.0
      %58 = vmatprep.subr.mxu0 0.0
      %59 = vmatpush1.xpose.msra.mxu0 0.0
      %60 = vmatprep.subr.mxu0 0.0
      %61 = vmatpush1.xpose.msra.mxu0 0.0
      %62 = vmatprep.subr.mxu0 0.0
      %63 = vmatpush1.xpose.msra.mxu0 0.0
      %64 = vmatprep.subr.mxu0 0.0
      %65 = vmatpush1.xpose.msra.mxu0 0.0
      %66 = vmatprep.subr.mxu0 0.0
      %67 = vmatpush1.xpose.msra.mxu0 0.0
      %68 = vmatprep.subr.mxu0 0.0
      %69 = vmatpush1.xpose.msra.mxu0 %v36
      %70 = vmatprep.subr.mxu0 0.0
      %71 = vmatpush2.xpose.msra.mxu0 0.0
      %72 = vmatprep.subr.mxu0 0.0
      %73 = vmatpush2.xpose.msra.mxu0 0.0
      %74 = vmatprep.subr.mxu0 0.0
      %75 = vmatpush2.xpose.msra.mxu0 0.0
      %76 = vmatprep.subr.mxu0 0.0
      %77 = vmatpush2.xpose.msra.mxu0 0.0
      %78 = vmatprep.subr.mxu0 0.0
      %79 = vmatpush2.xpose.msra.mxu0 0.0
      %80 = vmatprep.subr.mxu0 0.0
      %81 = vmatpush2.xpose.msra.mxu0 0.0
      %82 = vmatprep.subr.mxu0 0.0
      %83 = vmatpush2.xpose.msra.mxu0 0.0
      %84 = vmatprep.subr.mxu0 0.0
      %85 = vmatpush2.xpose.msra.mxu0 0.0
      %86 = vmatprep.subr.mxu0 0.0
      %87 = vmatpush2.xpose.msra.mxu0 0.0
      %88 = vmatprep.subr.mxu0 0.0
      %89 = vmatpush2.xpose.msra.mxu0 0.0
      %90 = vmatprep.subr.mxu0 0.0
      %91 = vmatpush2.xpose.msra.mxu0 0.0
      %92 = vmatprep.subr.mxu0 0.0
      %93 = vmatpush2.xpose.msra.mxu0 0.0
      %94 = vmatprep.subr.mxu0 0.0
      %95 = vmatpush2.xpose.msra.mxu0 0.0
      %96 = vmatprep.subr.mxu0 0.0
      %97 = vmatpush2.xpose.msra.mxu0 0.0
      %98 = vmatprep.subr.mxu0 0.0
      %99 = vmatpush2.xpose.msra.mxu0 0.0
      %100 = vmatprep.subr.mxu0 0.0
      %101 = vmatpush2.xpose.msra.mxu0 0.0
      %102 = vmatprep.mubr.f32.mxu0 0.0
      %103 = vmatmul.mubr.f32.gmra.mxu0 %v30
      %v104 = vpop.f32.mrf.mxu0
      %v105 = vadd.f32 0.0, %v104
      %v106 = vpop.f32.mrf.mxu0
      %107 = vmatprep.mubr.f32.mxu0 0.0
      %108 = vmatmul.mubr.f32.gmra.mxu0 %v33
      %v109 = vpop.f32.mrf.mxu0
      %v110 = vadd.f32 0.0, %v109
      %v111 = vpop.f32.mrf.mxu0
      %112 = vdwg.mxu0
      %vm113 = vcmask 64512
      %114 = vst.msk [vmem:[#allocation2] sm:$0xff] %vm113, %v105
      %115 = vst.msk [vmem:[#allocation2 + $0x8] sm:$0xff] %vm113, %v110
    $region25: #{tpu_custom_call.1} parent=1 // pred_fallthru
      _
    %v116 = vld [vmem:[%s0] sm:$0xff]
    %v117 = vld [vmem:[%s0 + $0x8] sm:$0xff]
    %v118 = vld [vmem:[%s1] sm:$0xff]
    %v119 = vld [vmem:[%s1 + $0x8] sm:$0xff]
    %v120 = vld [vmem:[%s1 + $0x10] sm:$0xff]
    %v121 = vld [vmem:[%s1 + $0x18] sm:$0xff]
    %v122 = vld [vmem:[%s1 + $0x20] sm:$0xff]
    %v123 = vld [vmem:[%s1 + $0x28] sm:$0xff]
    %v124 = vld [vmem:[%s1 + $0x30] sm:$0xff]
    %v125 = vld [vmem:[%s1 + $0x38] sm:$0xff]
    %v126 = vld [vmem:[%s1 + $0x40] sm:$0xff]
    %v127 = vld [vmem:[%s1 + $0x48] sm:$0xff]
    %v128 = vld [vmem:[%s1 + $0x50] sm:$0xff]
    %v129 = vld [vmem:[%s1 + $0x58] sm:$0xff]
    %v130 = vld [vmem:[%s1 + $0x60] sm:$0xff]
    %v131 = vld [vmem:[%s1 + $0x68] sm:$0xff]
    %v132 = vld [vmem:[%s1 + $0x70] sm:$0xff]
    %v133 = vld [vmem:[%s1 + $0x78] sm:$0xff]
    %v134 = vld [vmem:[#allocation2] sm:$0xff]
    %v135 = vld [vmem:[#allocation2 + $0x8] sm:$0xff]
    %v136 = vld [vmem:[%s4] sm:$0xff]
    %v137 = vld [vmem:[%s4 + $0x8] sm:$0xff]
    %v138 = vld [vmem:[%s4 + $0x10] sm:$0xff]
    %v139 = vld [vmem:[%s4 + $0x18] sm:$0xff]
    %v140 = vld [vmem:[%s4 + $0x20] sm:$0xff]
    %v141 = vld [vmem:[%s4 + $0x28] sm:$0xff]
    %v142 = vld [vmem:[%s4 + $0x30] sm:$0xff]
    %v143 = vld [vmem:[%s4 + $0x38] sm:$0xff]
    %v144 = vld [vmem:[%s4 + $0x40] sm:$0xff]
    %v145 = vld [vmem:[%s4 + $0x48] sm:$0xff]
    %v146 = vld [vmem:[%s4 + $0x50] sm:$0xff]
    %v147 = vld [vmem:[%s4 + $0x58] sm:$0xff]
    %v148 = vld [vmem:[%s4 + $0x60] sm:$0xff]
    %v149 = vld [vmem:[%s4 + $0x68] sm:$0xff]
    %v150 = vld [vmem:[%s4 + $0x70] sm:$0xff]
    %v151 = vld [vmem:[%s4 + $0x78] sm:$0xff]
    %vm152 = vcmask 64512
    %v154 = vsel %vm152, %v134, 0
    %v157 = vsel %vm152, %v135, 0
    %v160 = vsel %vm152, %v136, 0
    %v163 = vsel %vm152, %v137, 0
    %v166 = vsel %vm152, %v138, 0
    %v169 = vsel %vm152, %v139, 0
    %v172 = vsel %vm152, %v140, 0
    %v175 = vsel %vm152, %v141, 0
    %v178 = vsel %vm152, %v142, 0
    %v181 = vsel %vm152, %v143, 0
    %v184 = vsel %vm152, %v144, 0
    %v187 = vsel %vm152, %v145, 0
    %v190 = vsel %vm152, %v146, 0
    %v193 = vsel %vm152, %v147, 0
    %v196 = vsel %vm152, %v148, 0
    %v199 = vsel %vm152, %v149, 0
    %v202 = vsel %vm152, %v150, 0
    %v205 = vsel %vm152, %v151, 0
    %207 = vmatprep.subr.mxu0 0.0
    %208 = vmatpush1.xpose.msra.mxu0 %v205
    %209 = vmatprep.subr.mxu0 0.0
    %210 = vmatpush1.xpose.msra.mxu0 %v202
    %211 = vmatprep.subr.mxu0 0.0
    %212 = vmatpush1.xpose.msra.mxu0 %v199
    %213 = vmatprep.subr.mxu0 0.0
    %214 = vmatpush1.xpose.msra.mxu0 %v196
    %215 = vmatprep.subr.mxu0 0.0
    %216 = vmatpush1.xpose.msra.mxu0 %v193
    %217 = vmatprep.subr.mxu0 0.0
    %218 = vmatpush1.xpose.msra.mxu0 %v190
    %219 = vmatprep.subr.mxu0 0.0
    %220 = vmatpush1.xpose.msra.mxu0 %v187
    %221 = vmatprep.subr.mxu0 0.0
    %222 = vmatpush1.xpose.msra.mxu0 %v184
    %223 = vmatprep.subr.mxu0 0.0
    %224 = vmatpush1.xpose.msra.mxu0 %v181
    %225 = vmatprep.subr.mxu0 0.0
    %226 = vmatpush1.xpose.msra.mxu0 %v178
    %227 = vmatprep.subr.mxu0 0.0
    %228 = vmatpush1.xpose.msra.mxu0 %v175
    %229 = vmatprep.subr.mxu0 0.0
    %230 = vmatpush1.xpose.msra.mxu0 %v172
    %231 = vmatprep.subr.mxu0 0.0
    %232 = vmatpush1.xpose.msra.mxu0 %v169
    %233 = vmatprep.subr.mxu0 0.0
    %234 = vmatpush1.xpose.msra.mxu0 %v166
    %235 = vmatprep.subr.mxu0 0.0
    %236 = vmatpush1.xpose.msra.mxu0 %v163
    %237 = vmatprep.subr.mxu0 0.0
    %238 = vmatpush1.xpose.msra.mxu0 %v160
    %239 = vmatprep.subr.mxu0 0.0
    %240 = vmatpush2.xpose.msra.mxu0 0.0
    %241 = vmatprep.subr.mxu0 0.0
    %242 = vmatpush2.xpose.msra.mxu0 0.0
    %243 = vmatprep.subr.mxu0 0.0
    %244 = vmatpush2.xpose.msra.mxu0 0.0
    %245 = vmatprep.subr.mxu0 0.0
    %246 = vmatpush2.xpose.msra.mxu0 0.0
    %247 = vmatprep.subr.mxu0 0.0
    %248 = vmatpush2.xpose.msra.mxu0 0.0
    %249 = vmatprep.subr.mxu0 0.0
    %250 = vmatpush2.xpose.msra.mxu0 0.0
    %251 = vmatprep.subr.mxu0 0.0
    %252 = vmatpush2.xpose.msra.mxu0 0.0
    %253 = vmatprep.subr.mxu0 0.0
    %254 = vmatpush2.xpose.msra.mxu0 0.0
    %255 = vmatprep.subr.mxu0 0.0
    %256 = vmatpush2.xpose.msra.mxu0 0.0
    %257 = vmatprep.subr.mxu0 0.0
    %258 = vmatpush2.xpose.msra.mxu0 0.0
    %259 = vmatprep.subr.mxu0 0.0
    %260 = vmatpush2.xpose.msra.mxu0 0.0
    %261 = vmatprep.subr.mxu0 0.0
    %262 = vmatpush2.xpose.msra.mxu0 0.0
    %263 = vmatprep.subr.mxu0 0.0
    %264 = vmatpush2.xpose.msra.mxu0 0.0
    %265 = vmatprep.subr.mxu0 0.0
    %266 = vmatpush2.xpose.msra.mxu0 0.0
    %267 = vmatprep.subr.mxu0 0.0
    %268 = vmatpush2.xpose.msra.mxu0 0.0
    %269 = vmatprep.subr.mxu0 0.0
    %270 = vmatpush2.xpose.msra.mxu0 0.0
    %271 = vmatprep.mubr.f32.mxu0 0.0
    %272 = vmatmul.mubr.f32.gmra.mxu0 %v154
    %v273 = vpop.f32.mrf.mxu0
    %v274 = vadd.f32 0.0, %v273
    %v275 = vpop.f32.mrf.mxu0
    %276 = vmatprep.mubr.f32.mxu0 0.0
    %277 = vmatmul.mubr.f32.gmra.mxu0 %v157
    %v278 = vpop.f32.mrf.mxu0
    %v279 = vadd.f32 0.0, %v278
    %v280 = vpop.f32.mrf.mxu0
    %281 = vdwg.mxu0
    %vm282 = vcmask 261120
    %v284 = vsel %vm282, %v116, 0
    %v287 = vsel %vm282, %v117, 0
    %v290 = vsel %vm282, %v118, 0
    %v293 = vsel %vm282, %v119, 0
    %v296 = vsel %vm282, %v120, 0
    %v299 = vsel %vm282, %v121, 0
    %v302 = vsel %vm282, %v122, 0
    %v305 = vsel %vm282, %v123, 0
    %v308 = vsel %vm282, %v124, 0
    %v311 = vsel %vm282, %v125, 0
    %v314 = vsel %vm282, %v126, 0
    %v317 = vsel %vm282, %v127, 0
    %v320 = vsel %vm282, %v128, 0
    %v323 = vsel %vm282, %v129, 0
    %v326 = vsel %vm282, %v130, 0
    %v329 = vsel %vm282, %v131, 0
    %v332 = vsel %vm282, %v132, 0
    %v335 = vsel %vm282, %v133, 0
    %337 = vmatprep.subr.mxu0 0.0
    %338 = vmatpush1.xpose.msra.mxu0 %v335
    %339 = vmatprep.subr.mxu0 0.0
    %340 = vmatpush1.xpose.msra.mxu0 %v332
    %341 = vmatprep.subr.mxu0 0.0
    %342 = vmatpush1.xpose.msra.mxu0 %v329
    %343 = vmatprep.subr.mxu0 0.0
    %344 = vmatpush1.xpose.msra.mxu0 %v326
    %345 = vmatprep.subr.mxu0 0.0
    %346 = vmatpush1.xpose.msra.mxu0 %v323
    %347 = vmatprep.subr.mxu0 0.0
    %348 = vmatpush1.xpose.msra.mxu0 %v320
    %349 = vmatprep.subr.mxu0 0.0
    %350 = vmatpush1.xpose.msra.mxu0 %v317
    %351 = vmatprep.subr.mxu0 0.0
    %352 = vmatpush1.xpose.msra.mxu0 %v314
    %353 = vmatprep.subr.mxu0 0.0
    %354 = vmatpush1.xpose.msra.mxu0 %v311
    %355 = vmatprep.subr.mxu0 0.0
    %356 = vmatpush1.xpose.msra.mxu0 %v308
    %357 = vmatprep.subr.mxu0 0.0
    %358 = vmatpush1.xpose.msra.mxu0 %v305
    %359 = vmatprep.subr.mxu0 0.0
    %360 = vmatpush1.xpose.msra.mxu0 %v302
    %361 = vmatprep.subr.mxu0 0.0
    %362 = vmatpush1.xpose.msra.mxu0 %v299
    %363 = vmatprep.subr.mxu0 0.0
    %364 = vmatpush1.xpose.msra.mxu0 %v296
    %365 = vmatprep.subr.mxu0 0.0
    %366 = vmatpush1.xpose.msra.mxu0 %v293
    %367 = vmatprep.subr.mxu0 0.0
    %368 = vmatpush1.xpose.msra.mxu0 %v290
    %369 = vmatprep.subr.mxu0 0.0
    %370 = vmatpush2.xpose.msra.mxu0 0.0
    %371 = vmatprep.subr.mxu0 0.0
    %372 = vmatpush2.xpose.msra.mxu0 0.0
    %373 = vmatprep.subr.mxu0 0.0
    %374 = vmatpush2.xpose.msra.mxu0 0.0
    %375 = vmatprep.subr.mxu0 0.0
    %376 = vmatpush2.xpose.msra.mxu0 0.0
    %377 = vmatprep.subr.mxu0 0.0
    %378 = vmatpush2.xpose.msra.mxu0 0.0
    %379 = vmatprep.subr.mxu0 0.0
    %380 = vmatpush2.xpose.msra.mxu0 0.0
    %381 = vmatprep.subr.mxu0 0.0
    %382 = vmatpush2.xpose.msra.mxu0 0.0
    %383 = vmatprep.subr.mxu0 0.0
    %384 = vmatpush2.xpose.msra.mxu0 0.0
    %385 = vmatprep.subr.mxu0 0.0
    %386 = vmatpush2.xpose.msra.mxu0 0.0
    %387 = vmatprep.subr.mxu0 0.0
    %388 = vmatpush2.xpose.msra.mxu0 0.0
    %389 = vmatprep.subr.mxu0 0.0
    %390 = vmatpush2.xpose.msra.mxu0 0.0
    %391 = vmatprep.subr.mxu0 0.0
    %392 = vmatpush2.xpose.msra.mxu0 0.0
    %393 = vmatprep.subr.mxu0 0.0
    %394 = vmatpush2.xpose.msra.mxu0 0.0
    %395 = vmatprep.subr.mxu0 0.0
    %396 = vmatpush2.xpose.msra.mxu0 0.0
    %397 = vmatprep.subr.mxu0 0.0
    %398 = vmatpush2.xpose.msra.mxu0 0.0
    %399 = vmatprep.subr.mxu0 0.0
    %400 = vmatpush2.xpose.msra.mxu0 0.0
    %401 = vmatprep.mubr.f32.mxu0 0.0
    %402 = vmatmul.mubr.f32.gmra.mxu0 %v284
    %v403 = vpop.f32.mrf.mxu0
    %v404 = vadd.f32 %v274, %v403
    %v405 = vpop.f32.mrf.mxu0
    %406 = vmatprep.mubr.f32.mxu0 0.0
    %407 = vmatmul.mubr.f32.gmra.mxu0 %v287
    %v408 = vpop.f32.mrf.mxu0
    %v409 = vadd.f32 %v279, %v408
    %v410 = vpop.f32.mrf.mxu0
    %411 = vdwg.mxu0
    %v412 = vld [vmem:[%s2] sm:$0x1]
    %v414 = vlaneseq
    %v415 = vshrl.u32 %v414, 7
    %v416 = vsub.s32 0, %v415
    %v417 = vrot.slane %v412, %v416
    %v419 = vadd.f32 %v404, %v417
    %v420 = vadd.f32 %v409, %v417
    %421 = vst [vmem:[#allocation3] sm:$0xff] %v419
    %422 = vst [vmem:[#allocation3 + $0x8] sm:$0xff] %v420
    // Predicated region
    $region26: #{tpu_custom_call.1} parent=1 // pred_check
      _
    $region27: #{tpu_custom_call.1} parent=1 // pred_check_branch
      %424 = sbr.rel (0) target = $region29
    $region28: #{tpu_custom_call.1} parent=1 // pred_region
      %s426 = ssub.s32 256, 256
      %427 = vsyncadd [#allocation4], %s426
      %s428 = sshll.u32 [#allocation3], 4
      %s429 = int_to_ptr.vmem [resolvable:$true] %s428
      %434 = dma.vmem_to_hbm [thread:$0]  %s429, 256, %s5, [#allocation4], 128, 128, 8
    $region29: #{tpu_custom_call.1} parent=1 // pred_fallthru
      _
    // Predicated region
    $region30: #{tpu_custom_call.1} parent=1 // pred_check
      _
    $region31: #{tpu_custom_call.1} parent=1 // pred_check_branch
      %436 = sbr.rel (0) target = $region33
    $region32: #{tpu_custom_call.1} parent=1 // pred_region
      %437 = dma.done [#allocation4], 256
    $region33: #{tpu_custom_call.1} parent=1 // pred_fallthru
      _
    %438 = vsyncpa [#allocation4], 1

</llo_original>
